<compile_context>
chip_gen: v6e
topology: v6e:2x2x1
jax: 0.10.0
libtpu: 0.0.40
codegen_flags: <defaults>
</compile_context>

<pallas_src>
import functools

import jax
import jax.numpy as jnp
from jax import lax
from jax.experimental import pallas as pl
from jax.experimental.pallas import tpu as pltpu


def _round_up(x, m):
    return ((x + m - 1) // m) * m


def _cdiv(a, b):
    return -(-a // b)


def _num_tensorcores():
    """Best-effort TensorCore count per chip (2 on v7x, 1 on v5e/v6e).

    Falls back to 1 (always correct, just loses the megacore split).
    """
    # TODO(synk): verify with a profile that the leading 'parallel' grid axis
    # actually shards across v7x's 2 TCs; switch to pltpu.CORE_PARALLEL if not.
    try:
        info = pltpu.get_tpu_info()
    except Exception:
        return 1
    for name in ("num_cores", "core_count", "num_tensorcores",
                 "tensorcores_per_chip", "cores_per_chip"):
        v = getattr(info, name, None)
        try:
            v = int(v)
        except (TypeError, ValueError):
            continue
        if v >= 1:
            return v
    return 1


def _make_loss_kernel(loss_type: str, H: int, W: int, HW: int, HWp: int,
                      red_axis: int):
    """Per-tile reduction kernel. Input tile shape is (TB, HWp)."""
    if loss_type not in ("l2", "l1"):
        raise ValueError(f"unsupported loss type: {loss_type}")

    def kernel(x_ref, y_ref, err_ref, gdl_ref):
        k = pl.program_id(red_axis)

        # Resident (1, 1, HWp) vector accumulators in the output blocks:
        # init on the first step of the 'arbitrary' (reduction) axis.
        @pl.when(k == 0)
        def _():
            err_ref[...] = jnp.zeros_like(err_ref)
            gdl_ref[...] = jnp.zeros_like(gdl_ref)

        # (TB, HWp) difference in f32 (inputs may be lower precision on HBM).
        d = x_ref[...].astype(jnp.float32) - y_ref[...].astype(jnp.float32)

        if loss_type == "l2":
            err_elem = d * d
        else:  # 'l1'
            err_elem = jnp.abs(d)

        # 0/1 seam masks from a tiny (1, HWp) iota; applied as multiplies
        # (one vmul per element) rather than full-tile compare + select.
        col = lax.broadcasted_iota(jnp.int32, (1, HWp), 1)
        mh = col % W != (W - 1)                 # not last column of a row
        if HWp != HW:
            mh = jnp.logical_and(mh, col < HW)  # drop lane-padding columns
        mask_h = mh.astype(jnp.float32)
        mask_v = (col < (H - 1) * W).astype(jnp.float32)  # not last image row

        # Horizontal gradient: neighbour at w+1 (roll by HWp-1 == shift left
        # by 1: r[p] = d[(p+1) mod HWp]).  Vertical gradient: neighbour at
        # h+1 (flattened offset +W).  Rolls act per image row, so padded rows
        # and masked seams contribute exactly 0.
        gi = pltpu.roll(d, HWp - 1, 1) - d
        gj = pltpu.roll(d, HWp - W, 1) - d
        gdl_elem = gi * gi * mask_h + gj * gj * mask_v

        # Deferred reduction: only a sublane-direction partial sum per step;
        # the final (tiny) lane reduce happens in the wrapper.
        err_ref[...] += jnp.sum(err_elem, axis=0, keepdims=True)[None]
        gdl_ref[...] += jnp.sum(gdl_elem, axis=0, keepdims=True)[None]

    return kernel


@functools.partial(jax.jit, static_argnames=("by_batch", "loss_type"))
def mse_l1_and_gdl(inputs, targets, lambda_mse_l1, lambda_gdl,
                   by_batch=True, loss_type="l2"):
    """JAX/Pallas equivalent of MSE_L1_and_GDL.forward.

    inputs/targets: (B, C, H, W) arrays.
    Returns (loss, error, loss_gdl) as f32 scalars.
    """
    assert inputs.shape == targets.shape
    B, C, H, W = inputs.shape
    N = B * C
    HW = H * W
    itemsize = jnp.dtype(inputs.dtype).itemsize

    # Free (metadata-only) reshape to a lane-dense (N, H*W) layout.
    x = inputs.reshape(N, HW)
    y = targets.reshape(N, HW)

    # Pad the lane dim to a multiple of 128; padded columns are zero and are
    # masked out of the GDL term (and contribute 0 to the error term).
    HWp = _round_up(HW, 128)
    if HWp != HW:
        x = jnp.pad(x, ((0, 0), (0, HWp - HW)))
        y = jnp.pad(y, ((0, 0), (0, HWp - HW)))

    # --- tile choice: many image slices per grid step, ~8 MiB per input tile
    sub = 8 * max(1, 4 // itemsize)              # sublane multiple for dtype
    target_bytes = 8 * 1024 * 1024
    tb = max(1, target_bytes // max(1, HWp * itemsize))
    tb = max(sub, (tb // sub) * sub)             # multiple of `sub`, >= sub
    tb = min(tb, _round_up(N, sub))              # never bigger than (padded) N
    # TODO(synk): for very large single images (H*W*itemsize >> 8 MiB) also
    # tile spatially (split H with a 1-row halo) to respect v7x's 64 MiB VMEM.

    num_blocks = _cdiv(N, tb)
    n_tc = _num_tensorcores()
    ncore = n_tc if (n_tc > 1 and num_blocks >= n_tc) else 1
    kb = _cdiv(num_blocks, ncore)                # reduction steps per core
    n_pad = ncore * kb * tb
    if n_pad != N:
        pad = n_pad - N                          # zero rows contribute 0
        x = jnp.pad(x, ((0, pad), (0, 0)))
        y = jnp.pad(y, ((0, pad), (0, 0)))

    red_axis = 1 if ncore > 1 else 0
    kernel = _make_loss_kernel(loss_type, H, W, HW, HWp, red_axis)

    if ncore > 1:
        grid = (ncore, kb)
        in_map = lambda p, k: (p * kb + k, 0)
        out_map = lambda p, k: (p, 0, 0)
        dims = ("parallel", "arbitrary")
    else:
        grid = (kb,)
        in_map = lambda k: (k, 0)
        out_map = lambda k: (0, 0, 0)
        dims = ("arbitrary",)

    # Explicit VMEM budget: 2 inputs x double-buffer x tile + headroom, so the
    # same tile size compiles on v5e (16 MiB scoped default), v6e and v7x
    # (64 MiB physical).
    buf_bytes = 2 * 2 * tb * HWp * itemsize
    vmem_limit = int(max(32 << 20, min(buf_bytes + (8 << 20), 56 << 20)))

    cost = pl.CostEstimate(
        flops=12 * n_pad * HWp,
        transcendentals=0,
        bytes_accessed=2 * n_pad * HWp * itemsize + 2 * ncore * HWp * 4,
    )

    err_parts, gdl_parts = pl.pallas_call(
        kernel,
        out_shape=(
            jax.ShapeDtypeStruct((ncore, 1, HWp), jnp.float32),
            jax.ShapeDtypeStruct((ncore, 1, HWp), jnp.float32),
        ),
        grid_spec=pltpu.PrefetchScalarGridSpec(
            num_scalar_prefetch=0,
            grid=grid,
            in_specs=[
                pl.BlockSpec((tb, HWp), in_map),
                pl.BlockSpec((tb, HWp), in_map),
            ],
            out_specs=[
                pl.BlockSpec((1, 1, HWp), out_map),
                pl.BlockSpec((1, 1, HWp), out_map),
            ],
        ),
        compiler_params=pltpu.CompilerParams(
            dimension_semantics=dims,
            vmem_limit_bytes=vmem_limit,
        ),
        cost_estimate=cost,
    )(x, y)

    err_sum = jnp.sum(err_parts)
    gdl_sum = jnp.sum(gdl_parts)

    if by_batch:
        norm_div = jnp.float32(B * C)
    else:
        norm_div = jnp.float32(B * C * H * W)

    error = err_sum / norm_div
    loss_gdl = gdl_sum / norm_div
    loss = lambda_mse_l1 * error + lambda_gdl * loss_gdl
    return loss, error, loss_gdl


def _reference(inputs, targets, lambda_mse_l1, lambda_gdl, by_batch, loss_type):
    """Plain-JAX reference mirroring the PyTorch forward (computed in f32)."""
    x = inputs.astype(jnp.float32)
    y = targets.astype(jnp.float32)
    d = x - y
    if loss_type == "l2":
        error = jnp.sum(d ** 2)
    else:
        error = jnp.sum(jnp.abs(d))
    norm_div = (inputs.shape[0] * inputs.shape[1]) if by_batch else d.size
    error = error / norm_div
    gi = (jnp.diff(x, axis=-1) - jnp.diff(y, axis=-1)) ** 2
    gj = (jnp.diff(x, axis=-2) - jnp.diff(y, axis=-2)) ** 2
    gdl = (jnp.sum(gi) + jnp.sum(gj)) / norm_div
    return lambda_mse_l1 * error + lambda_gdl * gdl, error, gdl


if __name__ == "__main__":
    key = jax.random.PRNGKey(0)
    lambda_mse_l1 = jnp.float32(1.0)
    lambda_gdl = jnp.float32(0.5)

    # Square lane-aligned, non-square with lane padding (HW=240), and bf16.
    cases = [
        ((2, 4, 16, 16), jnp.float32),
        ((2, 3, 12, 20), jnp.float32),
        ((2, 4, 16, 16), jnp.bfloat16),
    ]

    ok = True
    for shape, dtype in cases:
        key, k1, k2 = jax.random.split(key, 3)
        inputs = jax.random.normal(k1, shape, dtype=jnp.float32).astype(dtype)
        targets = jax.random.normal(k2, shape, dtype=jnp.float32).astype(dtype)
        for by_batch in (True, False):
            for loss_type in ("l2", "l1"):
                loss, err, gdl = mse_l1_and_gdl(
                    inputs, targets, lambda_mse_l1, lambda_gdl,
                    by_batch=by_batch, loss_type=loss_type)
                jax.block_until_ready(loss)
                r_loss, r_err, r_gdl = _reference(
                    inputs, targets, lambda_mse_l1, lambda_gdl,
                    by_batch, loss_type)
                ok &= bool(jnp.allclose(loss, r_loss, rtol=2e-4, atol=1e-5))
                ok &= bool(jnp.allclose(err, r_err, rtol=2e-4, atol=1e-5))
                ok &= bool(jnp.allclose(gdl, r_gdl, rtol=2e-4, atol=1e-5))

    if ok:
        print("KERNEL_OK")
    else:
        print("KERNEL_MISMATCH")
</pallas_src>

<mosaic_0001>
module attributes {stable_mosaic.version = 11 : i64} {
  func.func @kernel(%arg0: i32, %arg1: memref<8x256xf32, #tpu.memory_space<vmem>>, %arg2: memref<8x256xf32, #tpu.memory_space<vmem>>, %arg3: memref<1x1x256xf32, #tpu.memory_space<vmem>>, %arg4: memref<1x1x256xf32, #tpu.memory_space<vmem>>) attributes {dimension_semantics = [#tpu.dimension_semantics<arbitrary>], iteration_bounds = array<i64: 1>, scalar_prefetch = 0 : i64, scratch_operands = 0 : i64, tpu.core_type = #tpu.core_type<tc>, window_params = [{transform_indices = @transform_0, window_bounds = array<i64: 8, 256>}, {transform_indices = @transform_1, window_bounds = array<i64: 8, 256>}, {pipeline_mode = #tpu.pipeline_mode<synchronous>, transform_indices = @transform_2, window_bounds = array<i64: 1, 1, 256>}, {pipeline_mode = #tpu.pipeline_mode<synchronous>, transform_indices = @transform_3, window_bounds = array<i64: 1, 1, 256>}]} {
    %c0_i32 = arith.constant 0 : i32
    %0 = arith.cmpi eq, %arg0, %c0_i32 : i32
    %1 = arith.extui %0 : i1 to i32
    %c0_i32_0 = arith.constant 0 : i32
    %2 = arith.cmpi ne, %1, %c0_i32_0 : i32
    scf.if %2 {
      %cst_22 = arith.constant 0.000000e+00 : f32
      %55 = vector.broadcast %cst_22 : f32 to vector<1x1x256xf32>
      %c0_23 = arith.constant 0 : index
      %c0_24 = arith.constant 0 : index
      %c0_25 = arith.constant 0 : index
      %56 = vector.load %arg3[%c0_23, %c0_24, %c0_25] : memref<1x1x256xf32, #tpu.memory_space<vmem>>, vector<1x1x256xf32>
      tpu.vector_store %arg3[%c0_23, %c0_24, %c0_25], %55 {strides = array<i32>} : memref<1x1x256xf32, #tpu.memory_space<vmem>>, vector<1x1x256xf32>,
      %cst_26 = arith.constant 0.000000e+00 : f32
      %57 = vector.broadcast %cst_26 : f32 to vector<1x1x256xf32>
      %c0_27 = arith.constant 0 : index
      %c0_28 = arith.constant 0 : index
      %c0_29 = arith.constant 0 : index
      %58 = vector.load %arg4[%c0_27, %c0_28, %c0_29] : memref<1x1x256xf32, #tpu.memory_space<vmem>>, vector<1x1x256xf32>
      tpu.vector_store %arg4[%c0_27, %c0_28, %c0_29], %57 {strides = array<i32>} : memref<1x1x256xf32, #tpu.memory_space<vmem>>, vector<1x1x256xf32>,
    } else {
    }
    %c0 = arith.constant 0 : index
    %c0_1 = arith.constant 0 : index
    %3 = vector.load %arg1[%c0, %c0_1] : memref<8x256xf32, #tpu.memory_space<vmem>>, vector<8x256xf32>
    %c0_2 = arith.constant 0 : index
    %c0_3 = arith.constant 0 : index
    %4 = vector.load %arg2[%c0_2, %c0_3] : memref<8x256xf32, #tpu.memory_space<vmem>>, vector<8x256xf32>
    %5 = arith.subf %3, %4 : vector<8x256xf32>
    %6 = arith.mulf %5, %5 : vector<8x256xf32>
    %7 = tpu.iota {dimensions = array<i32: 1>} : vector<1x256xi32>
    %c16_i32 = arith.constant 16 : i32
    %c0_i32_4 = arith.constant 0 : i32
    %8 = arith.cmpi eq, %c16_i32, %c0_i32_4 : i32
    %c1_i32 = arith.constant 1 : i32
    %9 = arith.select %8, %c1_i32, %c16_i32 : i32
    %10 = vector.broadcast %9 : i32 to vector<1x256xi32>
    %11 = arith.remsi %7, %10 : vector<1x256xi32>
    %c0_i32_5 = arith.constant 0 : i32
    %12 = vector.broadcast %c0_i32_5 : i32 to vector<1x256xi32>
    %13 = arith.cmpi ne, %11, %12 : vector<1x256xi32>
    %c0_i32_6 = arith.constant 0 : i32
    %14 = vector.broadcast %c0_i32_6 : i32 to vector<1x256xi32>
    %15 = arith.cmpi slt, %11, %14 : vector<1x256xi32>
    %c0_i32_7 = arith.constant 0 : i32
    %16 = arith.cmpi slt, %9, %c0_i32_7 : i32
    %17 = vector.broadcast %16 : i1 to vector<1x256xi1>
    %18 = vector.broadcast %17 : vector<1x256xi1> to vector<1x256xi1>
    %19 = arith.xori %15, %18 : vector<1x256xi1>
    %20 = arith.andi %19, %13 : vector<1x256xi1>
    %21 = vector.broadcast %9 : i32 to vector<1x256xi32>
    %22 = arith.addi %11, %21 : vector<1x256xi32>
    %23 = arith.select %20, %22, %11 : vector<1x256xi1>, vector<1x256xi32>
    %c15_i32 = arith.constant 15 : i32
    %24 = vector.broadcast %c15_i32 : i32 to vector<1x256xi32>
    %25 = arith.cmpi ne, %23, %24 : vector<1x256xi32>
    %26 = arith.extui %25 : vector<1x256xi1> to vector<1x256xi32>
    %27 = arith.sitofp %26 : vector<1x256xi32> to vector<1x256xf32>
    %c240_i32 = arith.constant 240 : i32
    %28 = vector.broadcast %c240_i32 : i32 to vector<1x256xi32>
    %29 = arith.cmpi slt, %7, %28 : vector<1x256xi32>
    %30 = arith.extui %29 : vector<1x256xi1> to vector<1x256xi32>
    %31 = arith.sitofp %30 : vector<1x256xi32> to vector<1x256xf32>
    %c255_i32 = arith.constant 255 : i32
    %32 = tpu.dynamic_rotate %5 by %c255_i32 dim 1 : vector<8x256xf32>, i32 -> vector<8x256xf32>
    %33 = arith.subf %32, %5 : vector<8x256xf32>
    %c240_i32_8 = arith.constant 240 : i32
    %34 = tpu.dynamic_rotate %5 by %c240_i32_8 dim 1 : vector<8x256xf32>, i32 -> vector<8x256xf32>
    %35 = arith.subf %34, %5 : vector<8x256xf32>
    %36 = arith.mulf %33, %33 : vector<8x256xf32>
    %37 = vector.broadcast %27 : vector<1x256xf32> to vector<8x256xf32>
    %38 = arith.mulf %36, %37 : vector<8x256xf32>
    %39 = arith.mulf %35, %35 : vector<8x256xf32>
    %40 = vector.broadcast %31 : vector<1x256xf32> to vector<8x256xf32>
    %41 = arith.mulf %39, %40 : vector<8x256xf32>
    %42 = arith.addf %38, %41 : vector<8x256xf32>
    %c0_9 = arith.constant 0 : index
    %c0_10 = arith.constant 0 : index
    %c0_11 = arith.constant 0 : index
    %43 = vector.load %arg3[%c0_9, %c0_10, %c0_11] : memref<1x1x256xf32, #tpu.memory_space<vmem>>, vector<1x1x256xf32>
    %cst = arith.constant dense<0.000000e+00> : vector<256xf32>
    %44 = vector.multi_reduction <add>, %6, %cst [0] : vector<8x256xf32> to vector<256xf32>
    %45 = vector.shape_cast %44 : vector<256xf32> to vector<1x256xf32>
    %46 = vector.shape_cast %45 : vector<1x256xf32> to vector<1x1x256xf32>
    %47 = arith.addf %43, %46 : vector<1x1x256xf32>
    %c0_12 = arith.constant 0 : index
    %c0_13 = arith.constant 0 : index
    %c0_14 = arith.constant 0 : index
    %48 = vector.load %arg3[%c0_12, %c0_13, %c0_14] : memref<1x1x256xf32, #tpu.memory_space<vmem>>, vector<1x1x256xf32>
    tpu.vector_store %arg3[%c0_12, %c0_13, %c0_14], %47 {strides = array<i32>} : memref<1x1x256xf32, #tpu.memory_space<vmem>>, vector<1x1x256xf32>,
    %c0_15 = arith.constant 0 : index
    %c0_16 = arith.constant 0 : index
    %c0_17 = arith.constant 0 : index
    %49 = vector.load %arg4[%c0_15, %c0_16, %c0_17] : memref<1x1x256xf32, #tpu.memory_space<vmem>>, vector<1x1x256xf32>
    %cst_18 = arith.constant dense<0.000000e+00> : vector<256xf32>
    %50 = vector.multi_reduction <add>, %42, %cst_18 [0] : vector<8x256xf32> to vector<256xf32>
    %51 = vector.shape_cast %50 : vector<256xf32> to vector<1x256xf32>
    %52 = vector.shape_cast %51 : vector<1x256xf32> to vector<1x1x256xf32>
    %53 = arith.addf %49, %52 : vector<1x1x256xf32>
    %c0_19 = arith.constant 0 : index
    %c0_20 = arith.constant 0 : index
    %c0_21 = arith.constant 0 : index
    %54 = vector.load %arg4[%c0_19, %c0_20, %c0_21] : memref<1x1x256xf32, #tpu.memory_space<vmem>>, vector<1x1x256xf32>
    tpu.vector_store %arg4[%c0_19, %c0_20, %c0_21], %53 {strides = array<i32>} : memref<1x1x256xf32, #tpu.memory_space<vmem>>, vector<1x1x256xf32>,
    return
  }
  func.func @transform_0(%arg0: i32) -> (i32, i32) {
    %c0_i32 = arith.constant 0 : i32
    %c0_i32_0 = arith.constant 0 : i32
    return %arg0, %c0_i32 : i32, i32
  }
  func.func @transform_1(%arg0: i32) -> (i32, i32) {
    %c0_i32 = arith.constant 0 : i32
    %c0_i32_0 = arith.constant 0 : i32
    return %arg0, %c0_i32 : i32, i32
  }
  func.func @transform_2(%arg0: i32) -> (i32, i32, i32) {
    %c0_i32 = arith.constant 0 : i32
    %c0_i32_0 = arith.constant 0 : i32
    %c0_i32_1 = arith.constant 0 : i32
    %c0_i32_2 = arith.constant 0 : i32
    return %c0_i32, %c0_i32_0, %c0_i32_1 : i32, i32, i32
  }
  func.func @transform_3(%arg0: i32) -> (i32, i32, i32) {
    %c0_i32 = arith.constant 0 : i32
    %c0_i32_0 = arith.constant 0 : i32
    %c0_i32_1 = arith.constant 0 : i32
    %c0_i32_2 = arith.constant 0 : i32
    return %c0_i32, %c0_i32_0, %c0_i32_1 : i32, i32, i32
  }
}

</mosaic_0001>

<llo_original>
// kernel: mse_l1_and_gdl.1
$region0: #{mse_l1_and_gdl.1}
  #allocation0 [shape = 'u32[]', space=smem, size = 0x4, offset = 0x4, fixed_abs, tag = 'smem constant byte address 0x4 - core index']
  #allocation1 [shape = 'u32[144,128]{1,0:T(1,128)}', space=vmem, size = 0x12000, scoped, tag = 'internal scratch']
  %s0 = inlined_call_operand.vmem [shape: f32[8,256], index: 0, kind: input, shape index: {}]
  %s1 = inlined_call_operand.vmem [shape: f32[8,256], index: 1, kind: input, shape index: {}]
  %s2 = inlined_call_operand.vmem [shape: f32[1,1,256], index: 2, kind: output, shape index: {0}]
  %s3 = inlined_call_operand.vmem [shape: f32[1,1,256], index: 3, kind: output, shape index: {1}]
  %4 = xla_tuple %s2, %s3
  %s5 = sld [smem:[#allocation0]]
  $region30: #{mse_l1_and_gdl.1} parent=0
    _
  %s7 = ssub.s32 1, %s5
  %s8 = scalar_select 0, %s7, %s5
  // Predicated region
  $region2: #{mse_l1_and_gdl.1} parent=0 // pred_check
    _
  $region3: #{mse_l1_and_gdl.1} parent=0 // pred_check_branch
    %10 = sbr.rel (0) target = $region5
  $region4: #{mse_l1_and_gdl.1} parent=0 // pred_region
    _
  $region5: #{mse_l1_and_gdl.1} parent=0 // pred_fallthru
    _
  // Predicated region
  $region6: #{mse_l1_and_gdl.1} parent=0 // pred_check
    _
  $region7: #{mse_l1_and_gdl.1} parent=0 // pred_check_branch
    %12 = sbr.rel (0) target = $region9
  $region8: #{mse_l1_and_gdl.1} parent=0 // pred_region
    _
  $region9: #{mse_l1_and_gdl.1} parent=0 // pred_fallthru
    _
  %p13 = scmp.eq.s32.totalorder 0, 0
  // Predicated region
  $region10: #{mse_l1_and_gdl.1} parent=0 // pred_check
    %p14 = pneg %p13
  $region11: #{mse_l1_and_gdl.1} parent=0 // pred_check_branch
    %16 = sbr.rel (%p14) target = $region13
  $region12: #{mse_l1_and_gdl.1} parent=0 // pred_region
    %v17 = vlaneseq
    %vm18 = vcmp.ge.s32.totalorder %v17, 0
    %vm19 = vcmp.lt.s32.totalorder %v17, 256
    %vm20 = vmand %vm18, %vm19
    %21 = vst.msk [vmem:[%s2] sm:$0x3] %vm20, 0.0
    %22 = vst.msk [vmem:[%s3] sm:$0x3] %vm20, 0.0
  $region13: #{mse_l1_and_gdl.1} parent=0 // pred_fallthru
    _
  %v23 = vld [vmem:[%s0] sm:$0xff]
  %v24 = vld [vmem:[%s0 + $0x8] sm:$0xff]
  %v25 = vld [vmem:[%s1] sm:$0xff]
  %v26 = vld [vmem:[%s1 + $0x8] sm:$0xff]
  %v27 = vsub.f32 %v23, %v25
  %v28 = vsub.f32 %v24, %v26
  %v29 = vmul.f32 %v27, %v27
  %v30 = vmul.f32 %v28, %v28
  %v31 = vlaneseq
  %v32 = vand.u32 %v31, 127
  %v33 = vadd.s32 %v32, 128
  %vm34 = vcmp.lt.s32.totalorder %v32, 0
  %v35 = vsub.s32 0, %v32
  %v36 = vsel %vm34, %v35, %v32
  %v37 = vshrl.u32 %v36, 4
  %v38 = vand.u32 %v36, 15
  %v39 = vsub.s32 0, %v38
  %v40 = vsel %vm34, %v39, %v38
  %vm41 = vcmp.lt.s32.totalorder %v33, 0
  %v42 = vsub.s32 0, %v33
  %v43 = vsel %vm41, %v42, %v33
  %v44 = vshrl.u32 %v43, 4
  %v45 = vand.u32 %v43, 15
  %v46 = vsub.s32 0, %v45
  %v47 = vsel %vm41, %v46, %v45
  %vm48 = vcmp.ne.s32.totalorder %v40, 0
  %vm49 = vcmp.ne.s32.totalorder %v47, 0
  %vm50 = vcmp.lt.s32.totalorder %v40, 0
  %vm51 = vcmp.lt.s32.totalorder %v47, 0
  %vm52 = vmand %vm50, %vm48
  %vm53 = vmand %vm51, %vm49
  %v54 = vadd.s32 %v40, 16
  %v55 = vadd.s32 %v47, 16
  %v56 = vsel %vm52, %v54, %v40
  %v57 = vsel %vm53, %v55, %v47
  %vm58 = vcmp.ne.s32.totalorder %v56, 15
  %vm59 = vcmp.ne.s32.totalorder %v57, 15
  %v60 = vsel %vm58, 1, 0
  %v61 = vsel %vm59, 1, 0
  %v62 = vcvt.s32.f32 %v60
  %v63 = vcvt.s32.f32 %v61
  %vm64 = vcmp.lt.s32.totalorder %v32, 240
  %vm65 = vcmp.lt.s32.totalorder %v33, 240
  %v66 = vsel %vm64, 1, 0
  %v67 = vsel %vm65, 1, 0
  %v68 = vcvt.s32.f32 %v66
  %v69 = vcvt.s32.f32 %v67
  %70 = vrot.lane.b32.xlu0 %v27, 127
  %v71 = vpop.permute.xlu0 %70
  %72 = vrot.lane.b32.xlu0 %v28, 127
  %v73 = vpop.permute.xlu0 %72
  %vm74 = vcmp.lt.s32.totalorder %v32, 127
  %v75 = vsel %vm74, %v71, %v73
  %v76 = vsel %vm74, %v73, %v71
  %v77 = vsub.f32 %v75, %v27
  %v78 = vsub.f32 %v76, %v28
  %79 = vrot.lane.b32.xlu0 %v27, 112
  %v80 = vpop.permute.xlu0 %79
  %81 = vrot.lane.b32.xlu0 %v28, 112
  %v82 = vpop.permute.xlu0 %81
  %vm83 = vcmp.lt.s32.totalorder %v32, 112
  %v84 = vsel %vm83, %v80, %v82
  %v85 = vsel %vm83, %v82, %v80
  %v86 = vsub.f32 %v84, %v27
  %v87 = vsub.f32 %v85, %v28
  %v88 = vmul.f32 %v77, %v77
  %v89 = vmul.f32 %v78, %v78
  %v90 = vmul.f32 %v88, %v62
  %v91 = vmul.f32 %v89, %v63
  %v92 = vmul.f32 %v86, %v86
  %v93 = vmul.f32 %v87, %v87
  %v94 = vmul.f32 %v92, %v68
  %v95 = vmul.f32 %v93, %v69
  %v96 = vadd.f32 %v90, %v94
  %v97 = vadd.f32 %v91, %v95
  %v98 = vld [vmem:[%s2] sm:$0x3]
  %v99 = vrot.slane %v29, 4
  %v100 = vadd.f32 %v29, %v99
  %v101 = vrot.slane %v100, 2
  %v102 = vadd.f32 %v100, %v101
  %v103 = vrot.slane %v102, 1
  %v104 = vadd.f32 %v102, %v103
  %v105 = vrot.slane %v30, 4
  %v106 = vadd.f32 %v30, %v105
  %v107 = vrot.slane %v106, 2
  %v108 = vadd.f32 %v106, %v107
  %v109 = vrot.slane %v108, 1
  %v110 = vadd.f32 %v108, %v109
  %v113 = vcombine.low %v104, %v110
  %v115 = vunpack.c.l.s4 1966171168
  %v116 = vunpack.c.0.s8 %v115
  %v117 = vlaneseq
  %v118 = vshrl.u32 %v117, 7
  %v119 = vsub.s32 %v116, %v118
  %v120 = vrot.slane %v113, %v119
  %v122 = vunpack.c.l.s4 1966171168
  %v123 = vunpack.c.0.s8 %v122
  %v124 = vlaneseq
  %v125 = vshrl.u32 %v124, 7
  %v126 = vsub.s32 %v123, %v125
  %v127 = vrot.slane %v120, %v126
  %v129 = vadd.f32 %v98, %v127
  %v130 = vlaneseq
  %vm131 = vcmp.ge.s32.totalorder %v130, 0
  %vm132 = vcmp.lt.s32.totalorder %v130, 256
  %vm133 = vmand %vm131, %vm132
  %134 = vst.msk [vmem:[%s2] sm:$0x3] %vm133, %v129
  %v135 = vld [vmem:[%s3] sm:$0x3]
  %v136 = vrot.slane %v96, 4
  %v137 = vadd.f32 %v96, %v136
  %v138 = vrot.slane %v137, 2
  %v139 = vadd.f32 %v137, %v138
  %v140 = vrot.slane %v139, 1
  %v141 = vadd.f32 %v139, %v140
  %v142 = vrot.slane %v97, 4
  %v143 = vadd.f32 %v97, %v142
  %v144 = vrot.slane %v143, 2
  %v145 = vadd.f32 %v143, %v144
  %v146 = vrot.slane %v145, 1
  %v147 = vadd.f32 %v145, %v146
  %v150 = vcombine.low %v141, %v147
  %v152 = vunpack.c.l.s4 1966171168
  %v153 = vunpack.c.0.s8 %v152
  %v154 = vlaneseq
  %v155 = vshrl.u32 %v154, 7
  %v156 = vsub.s32 %v153, %v155
  %v157 = vrot.slane %v150, %v156
  %v159 = vunpack.c.l.s4 1966171168
  %v160 = vunpack.c.0.s8 %v159
  %v161 = vlaneseq
  %v162 = vshrl.u32 %v161, 7
  %v163 = vsub.s32 %v160, %v162
  %v164 = vrot.slane %v157, %v163
  %v166 = vadd.f32 %v135, %v164
  %167 = vst.msk [vmem:[%s3] sm:$0x3] %vm133, %v166
  // Predicated region
  $region14: #{mse_l1_and_gdl.1} parent=0 // pred_check
    _
  $region15: #{mse_l1_and_gdl.1} parent=0 // pred_check_branch
    %169 = sbr.rel (0) target = $region17
  $region16: #{mse_l1_and_gdl.1} parent=0 // pred_region
    _
  $region17: #{mse_l1_and_gdl.1} parent=0 // pred_fallthru
    _
  // Predicated region
  $region18: #{mse_l1_and_gdl.1} parent=0 // pred_check
    _
  $region19: #{mse_l1_and_gdl.1} parent=0 // pred_check_branch
    %171 = sbr.rel (0) target = $region21
  $region20: #{mse_l1_and_gdl.1} parent=0 // pred_region
    _
  $region21: #{mse_l1_and_gdl.1} parent=0 // pred_fallthru
    _
  // Predicated region
  $region22: #{mse_l1_and_gdl.1} parent=0 // pred_check
    _
  $region23: #{mse_l1_and_gdl.1} parent=0 // pred_check_branch
    %173 = sbr.rel (0) target = $region25
  $region24: #{mse_l1_and_gdl.1} parent=0 // pred_region
    _
  $region25: #{mse_l1_and_gdl.1} parent=0 // pred_fallthru
    _
  // Predicated region
  $region26: #{mse_l1_and_gdl.1} parent=0 // pred_check
    _
  $region27: #{mse_l1_and_gdl.1} parent=0 // pred_check_branch
    %175 = sbr.rel (0) target = $region29
  $region28: #{mse_l1_and_gdl.1} parent=0 // pred_region
    _
  $region29: #{mse_l1_and_gdl.1} parent=0 // pred_fallthru
    _

</llo_original>
